<compile_context>
chip_gen: v7x
topology: tpu7x:2x2x1
jax: 0.10.0
libtpu: 0.0.40
codegen_flags: <defaults>
</compile_context>

<pallas_src>
import jax
import jax.numpy as jnp
from jax.experimental import pallas as pl
from jax.experimental.pallas import tpu as pltpu

LANES = 128
BLOCK_ROWS = 2048  # (2048, 128) f32 block = 1 MiB per buffer


def _add_bias_kernel(x_ref, bias_ref, o_ref):
    # x_ref / o_ref : (block_rows, 128) VMEM tiles
    # bias_ref      : (1, 128) resident row, broadcast across sublanes
    o_ref[...] = x_ref[...] + bias_ref[...]


@jax.jit
def inplace_add2(x: jax.Array, bias: jax.Array) -> jax.Array:
    """Pallas equivalent of `x.add_(bias); return x` for x: (B, C), bias: (1, C)."""
    B, C = x.shape
    assert bias.shape == (1, C)
    assert LANES % C == 0, "channel count must divide 128 for the tiled bias row"

    # One lane-dense bias row; channel pattern repeats identically every row
    # of the flattened slab because 128 % C == 0.
    bias_row = jnp.tile(bias, (1, LANES // C))  # (1, 128)

    # Zero-copy row-major flatten; pad only the (tiny) tail to a full 128 lanes.
    total = B * C
    flat = x.reshape(-1)
    pad = (-total) % LANES
    if pad:
        flat = jnp.pad(flat, (0, pad))
    rows = flat.shape[0] // LANES
    slab = flat.reshape(rows, LANES)  # zero-copy, lane+sublane dense

    if rows <= BLOCK_ROWS:
        # Small input: single full-array block, no pipeline overhead.
        block_rows = rows
        grid = (1,)
    else:
        # Large input: 1 MiB blocks, auto double-buffered DMA pipeline.
        block_rows = BLOCK_ROWS
        grid = (pl.cdiv(rows, BLOCK_ROWS),)  # edge block handled by masking

    out_slab = pl.pallas_call(
        _add_bias_kernel,
        out_shape=jax.ShapeDtypeStruct((rows, LANES), x.dtype),
        grid=grid,
        in_specs=[
            pl.BlockSpec((block_rows, LANES), lambda i: (i, 0)),
            pl.BlockSpec((1, LANES), lambda i: (0, 0)),  # stays resident
        ],
        out_specs=pl.BlockSpec((block_rows, LANES), lambda i: (i, 0)),
        # "In place": reuse the slab's buffer (a view of x) for the output,
        # mirroring torch's add_. Pair with donate_argnums=0 at the call site
        # for true end-to-end buffer reuse when no tail padding is needed.
        input_output_aliases={0: 0},
        compiler_params=pltpu.CompilerParams(
            dimension_semantics=("parallel",),
        ),
    )(slab, bias_row)

    out_flat = out_slab.reshape(-1)
    if pad:
        out_flat = out_flat[:total]
    return out_flat.reshape(B, C)


if __name__ == "__main__":
    # Shapes consistent with the module: x: (batch, 4) with dynamic batch,
    # bias: (1, 4) of ones (matches module __init__).
    C = 4
    bias = jnp.ones((1, C), dtype=jnp.float32)
    key = jax.random.PRNGKey(0)

    ok = True
    for B in (3, 5):  # matches the module's example inputs (dynamic batch dim)
        key, sub = jax.random.split(key)
        x = jax.random.uniform(sub, (B, C), dtype=jnp.float32)
        ref = x + bias  # torch `x.add_(bias); return x` == broadcast add
        out = jax.block_until_ready(inplace_add2(x, bias))
        ok &= out.shape == (B, C) and out.dtype == jnp.float32
        ok &= bool(jnp.allclose(out, ref))

    assert ok, "mismatch vs reference"
    print("KERNEL_OK")
</pallas_src>

<mosaic_0001>
module attributes {stable_mosaic.version = 11 : i64} {
  func.func @_add_bias_kernel(%arg0: i32, %arg1: memref<1x128xf32, #tpu.memory_space<vmem>>, %arg2: memref<1x128xf32, #tpu.memory_space<vmem>>, %arg3: memref<1x128xf32, #tpu.memory_space<vmem>>) attributes {dimension_semantics = [#tpu.dimension_semantics<parallel>], iteration_bounds = array<i64: 1>, scalar_prefetch = 0 : i64, scratch_operands = 0 : i64, tpu.core_type = #tpu.core_type<tc>, window_params = [{transform_indices = @transform_0, window_bounds = array<i64: 1, 128>}, {pipeline_mode = #tpu.pipeline_mode<synchronous>, transform_indices = @transform_1, window_bounds = array<i64: 1, 128>}, {transform_indices = @transform_2, window_bounds = array<i64: 1, 128>}]} {
    %c0 = arith.constant 0 : index
    %c0_0 = arith.constant 0 : index
    %0 = vector.load %arg1[%c0, %c0_0] : memref<1x128xf32, #tpu.memory_space<vmem>>, vector<1x128xf32>
    %c0_1 = arith.constant 0 : index
    %c0_2 = arith.constant 0 : index
    %1 = vector.load %arg2[%c0_1, %c0_2] : memref<1x128xf32, #tpu.memory_space<vmem>>, vector<1x128xf32>
    %2 = arith.addf %0, %1 : vector<1x128xf32>
    %c0_3 = arith.constant 0 : index
    %c0_4 = arith.constant 0 : index
    %3 = vector.load %arg3[%c0_3, %c0_4] : memref<1x128xf32, #tpu.memory_space<vmem>>, vector<1x128xf32>
    tpu.vector_store %arg3[%c0_3, %c0_4], %2 {strides = array<i32>} : memref<1x128xf32, #tpu.memory_space<vmem>>, vector<1x128xf32>,
    return
  }
  func.func @transform_0(%arg0: i32) -> (i32, i32) {
    %c0_i32 = arith.constant 0 : i32
    %c0_i32_0 = arith.constant 0 : i32
    return %arg0, %c0_i32 : i32, i32
  }
  func.func @transform_1(%arg0: i32) -> (i32, i32) {
    %c0_i32 = arith.constant 0 : i32
    %c0_i32_0 = arith.constant 0 : i32
    %c0_i32_1 = arith.constant 0 : i32
    return %c0_i32, %c0_i32_0 : i32, i32
  }
  func.func @transform_2(%arg0: i32) -> (i32, i32) {
    %c0_i32 = arith.constant 0 : i32
    %c0_i32_0 = arith.constant 0 : i32
    return %arg0, %c0_i32 : i32, i32
  }
}

</mosaic_0001>

<llo_original>
// kernel: inplace_add2.1
$region0: #{inplace_add2.1}
  #allocation0 [shape = 'u32[]', space=smem, size = 0x4, offset = 0x4, fixed_abs, tag = 'smem constant byte address 0x4 - core index']
  #allocation1 [shape = 'u32[144,128]{1,0:T(1,128)}', space=vmem, size = 0x12000, scoped, tag = 'internal scratch']
  %s0 = inlined_call_operand.vmem [shape: f32[1,128], index: 0, kind: input, shape index: {}, may-alias: {0,2}]
  %s1 = inlined_call_operand.vmem [shape: f32[1,128], index: 1, kind: input, shape index: {}]
  %s2 = inlined_call_operand.vmem [shape: f32[1,128], index: 2, kind: output, shape index: {}, may-alias: {0,2}]
  %s3 = sld [smem:[#allocation0]]
  $region18: #{inplace_add2.1} parent=0
    _
  %s5 = ssub.s32 1, %s3
  %s6 = scalar_select 0, %s5, %s3
  // Predicated region
  $region2: #{inplace_add2.1} parent=0 // pred_check
    _
  $region3: #{inplace_add2.1} parent=0 // pred_check_branch
    %8 = sbr.rel (0) target = $region5
  $region4: #{inplace_add2.1} parent=0 // pred_region
    _
  $region5: #{inplace_add2.1} parent=0 // pred_fallthru
    _
  // Predicated region
  $region6: #{inplace_add2.1} parent=0 // pred_check
    _
  $region7: #{inplace_add2.1} parent=0 // pred_check_branch
    %10 = sbr.rel (0) target = $region9
  $region8: #{inplace_add2.1} parent=0 // pred_region
    _
  $region9: #{inplace_add2.1} parent=0 // pred_fallthru
    _
  %v11 = vld [vmem:[%s0] sm:$0x1]
  %v12 = vld [vmem:[%s1] sm:$0x1]
  %v13 = vadd.f32 %v11, %v12
  %14 = vst [vmem:[%s2] sm:$0x1] %v13
  // Predicated region
  $region10: #{inplace_add2.1} parent=0 // pred_check
    _
  $region11: #{inplace_add2.1} parent=0 // pred_check_branch
    %16 = sbr.rel (0) target = $region13
  $region12: #{inplace_add2.1} parent=0 // pred_region
    _
  $region13: #{inplace_add2.1} parent=0 // pred_fallthru
    _
  // Predicated region
  $region14: #{inplace_add2.1} parent=0 // pred_check
    _
  $region15: #{inplace_add2.1} parent=0 // pred_check_branch
    %18 = sbr.rel (0) target = $region17
  $region16: #{inplace_add2.1} parent=0 // pred_region
    _
  $region17: #{inplace_add2.1} parent=0 // pred_fallthru
    _

</llo_original>
